<compile_context>
chip_gen: v7x
topology: tpu7x:2x2x1
jax: 0.10.0
libtpu: 0.0.40
codegen_flags: <defaults>
</compile_context>

<pallas_src>
import math

import jax
import jax.numpy as jnp
from jax.experimental import pallas as pl
from jax.experimental.pallas import tpu as pltpu

N_OSC = 64
BANDS = ("delta", "theta", "alpha", "beta", "gamma")
P_BAND = N_OSC // len(BANDS)          # 12
OUT_DIM = P_BAND * len(BANDS)         # 60  (true output width)
LANE = 128                            # lane-padded width for osc / weights / output
TILE_T_MAX = 2048                     # T tile cap (sublane axis)
TWO_PI = 2.0 * math.pi


def _oscillator_kernel(t_ref, params_ref, w_ref, out_ref):
    # t_ref:      (TILE_T, 1)     time values for this tile (f32)
    # params_ref: (8, 128) f32    row0 = 2*pi*freq, row1 = phase, row2 = fused bias
    # w_ref:      (128, 128) bf16 fused weights  diag(amp) @ coupling @ band_W.T
    # out_ref:    (TILE_T, 128)   lane-dense fused band outputs (f32)
    t = t_ref[...]                                    # (TILE_T, 1)
    w_freq = params_ref[0:1, :]                       # (1, 128)  = 2*pi*frequencies
    phase = params_ref[1:2, :]                        # (1, 128)
    bias = params_ref[2:3, :]                         # (1, 128)  fused bias (f32)

    # Oscillation generation (VPU + EUP).  Padded lanes have freq=phase=0 -> 0,
    # and their weight rows are zero anyway.
    angle = w_freq * t + phase                        # (TILE_T, 128) via broadcast
    osc = jnp.sin(angle)                              # f32 sin
    # TODO(synk): a bf16 sin would ~2x VALU/EUP throughput on v6e/v7x, but raw
    # angles reach O(100) rad here, so it needs mod-2*pi range reduction first.

    # Single fused bf16 matmul (MXU), f32 accumulate: coupling + all 5 band
    # projections (+ amplitudes), then add the fused bias (ext_input + band b).
    acc = jnp.dot(osc.astype(jnp.bfloat16), w_ref[...],
                  preferred_element_type=jnp.float32)
    out_ref[...] = (acc + bias).astype(out_ref.dtype)


def _run_kernel(t2d, packed_params, w_fused_bf16, tile_t):
    T_pad = t2d.shape[0]
    grid = (T_pad // tile_t,)
    cost = pl.CostEstimate(
        flops=int(2 * T_pad * LANE * LANE + 3 * T_pad * LANE),
        transcendentals=int(T_pad * LANE),
        bytes_accessed=int(4 * T_pad + 4 * 8 * LANE + 2 * LANE * LANE
                           + 4 * T_pad * LANE),
    )
    return pl.pallas_call(
        _oscillator_kernel,
        out_shape=jax.ShapeDtypeStruct((T_pad, LANE), jnp.float32),
        grid_spec=pltpu.PrefetchScalarGridSpec(
            num_scalar_prefetch=0,
            grid=grid,
            in_specs=[
                pl.BlockSpec((tile_t, 1), lambda i: (i, 0)),      # t tile
                pl.BlockSpec((8, LANE), lambda i: (0, 0)),        # packed params (resident)
                pl.BlockSpec((LANE, LANE), lambda i: (0, 0)),     # fused bf16 weights (resident)
            ],
            out_specs=pl.BlockSpec((tile_t, LANE), lambda i: (i, 0)),
        ),
        compiler_params=pltpu.CompilerParams(
            dimension_semantics=("parallel",)),                   # 2x on v7x, no-op v5e/v6e
        cost_estimate=cost,
    )(t2d, packed_params, w_fused_bf16)


def _round_up(x, m):
    return ((x + m - 1) // m) * m


def _choose_tile_t(T):
    T8 = _round_up(max(T, 1), 8)
    if T8 <= 1024:
        return T8                       # single tile, no grid-step overhead
    # >=4 grid steps keeps both v7x TensorCores fed with double-buffered work;
    # the 2048-row cap amortizes the ~0.35us/step overhead on v5e/v6e for big T.
    return max(256, min(TILE_T_MAX, _round_up((T8 + 3) // 4, 8)))


def init_params(key, n_oscillators=N_OSC):
    """Deterministic synthetic parameter init matching the PyTorch __init__ shapes."""
    ks = jax.random.split(key, 3 + 2 * len(BANDS))
    params = {
        "frequencies": jax.random.normal(ks[0], (n_oscillators,), jnp.float32),
        "phases": jax.random.normal(ks[1], (n_oscillators,), jnp.float32),
        "amplitudes": jnp.ones((n_oscillators,), jnp.float32),
        "coupling_matrix": jax.random.normal(ks[2], (n_oscillators, n_oscillators),
                                             jnp.float32) * 0.1,
    }
    p = n_oscillators // len(BANDS)
    lim = 1.0 / math.sqrt(n_oscillators)   # nn.Linear default init bound
    band_w, band_b = {}, {}
    for i, band in enumerate(BANDS):
        band_w[band] = jax.random.uniform(ks[3 + 2 * i], (p, n_oscillators),
                                          jnp.float32, -lim, lim)
        band_b[band] = jax.random.uniform(ks[4 + 2 * i], (p,),
                                          jnp.float32, -lim, lim)
    params["band_w"] = band_w
    params["band_b"] = band_b
    return params


def neural_oscillator_forward(params, t, external_input=None):
    """JAX wrapper mirroring NeuralOscillatorNetwork.forward."""
    n = params["frequencies"].shape[0]
    T = t.shape[0]

    # --- external input -> single (1, n) row (PyTorch uses row 0 only, broadcast over T) ---
    if external_input is None:
        ext_row = jnp.zeros((1, n), jnp.float32)
    else:
        ei = external_input
        if ei.ndim == 2:
            ei = ei[0]
        feats = ei.shape[0]
        if feats >= n:
            row = ei[:n]
        else:
            row = jnp.concatenate([ei, jnp.zeros((n - feats,), ei.dtype)])
        ext_row = row[None, :].astype(jnp.float32)

    # --- algebraic fusion of amplitudes + coupling + 5 band Linear layers (wrapper, one-time) ---
    wcat = jnp.concatenate([params["band_w"][b].T for b in BANDS], axis=1)   # (n, 60)
    bcat = jnp.concatenate([params["band_b"][b] for b in BANDS])[None, :]    # (1, 60)
    w_fused = (params["amplitudes"][:, None] * params["coupling_matrix"]) @ wcat   # (n, 60)
    b_fused = ext_row @ wcat + bcat                                          # (1, 60)

    # --- lane-pad weights/bias to 128x128 / 128; weights pre-cast to bf16 for the MXU ---
    w_pad = jnp.zeros((LANE, LANE), jnp.float32).at[:n, :OUT_DIM].set(w_fused)
    w_pad_bf16 = w_pad.astype(jnp.bfloat16)
    b_pad = jnp.zeros((LANE,), jnp.float32).at[:OUT_DIM].set(b_fused[0])

    # --- pack tiny per-oscillator params + fused bias into one (8, 128) tile ---
    packed = jnp.zeros((8, LANE), jnp.float32)
    packed = packed.at[0, :n].set(TWO_PI * params["frequencies"])   # 2*pi folded in
    packed = packed.at[1, :n].set(params["phases"])
    packed = packed.at[2, :].set(b_pad)

    # --- pad T to a sublane-friendly multiple of the T tile ---
    tile_t = _choose_tile_t(T)
    T_pad = _round_up(T, tile_t)
    t2d = jnp.zeros((T_pad, 1), jnp.float32).at[:T, 0].set(t.astype(jnp.float32))

    out = _run_kernel(t2d, packed, w_pad_bf16, tile_t)   # (T_pad, 128)
    out = out[:T, :OUT_DIM]                              # back to (T, 60)
    # TODO(synk): on v5e with very large T, a bf16 or 64-lane output would halve
    # HBM write traffic; kept f32/128-lane here since v6e/v7x are compute-bound.

    return {band: out[:, i * P_BAND:(i + 1) * P_BAND] for i, band in enumerate(BANDS)}


def _reference_forward(params, t, external_input=None):
    """Plain-JAX f32 reference mirroring the PyTorch module exactly."""
    n = params["frequencies"].shape[0]
    osc = params["amplitudes"][None, :] * jnp.sin(
        TWO_PI * params["frequencies"][None, :] * t[:, None] + params["phases"][None, :])
    coupled = osc @ params["coupling_matrix"]
    if external_input is not None:
        ei = external_input[0] if external_input.ndim == 2 else external_input
        feats = ei.shape[0]
        if feats >= n:
            row = ei[:n]
        else:
            row = jnp.concatenate([ei, jnp.zeros((n - feats,), ei.dtype)])
        coupled = coupled + row[None, :]
    return {b: coupled @ params["band_w"][b].T + params["band_b"][b] for b in BANDS}


if __name__ == "__main__":
    key = jax.random.PRNGKey(0)
    pkey, tkey, ekey = jax.random.split(key, 3)

    params = init_params(pkey)

    # Tolerance accounts for the bf16 MXU inputs (f32 accumulate); outputs are O(0.5)
    # so observed error is ~1e-3, well inside 2e-2.
    ATOL = 2e-2
    RTOL = 2e-2

    # --- small test: T=8, 2-D external input with features >= n_oscillators ---
    T = 8
    t = jnp.linspace(0.0, 1.0, T, dtype=jnp.float32)
    external_input = jax.random.normal(ekey, (2, 80), jnp.float32)

    band_osc = neural_oscillator_forward(params, t, external_input)
    jax.block_until_ready(band_osc)

    for band in BANDS:
        assert band_osc[band].shape == (T, P_BAND), band_osc[band].shape

    ref = _reference_forward(params, t, external_input)
    for band in BANDS:
        assert jnp.allclose(band_osc[band], ref[band], atol=ATOL, rtol=RTOL), band

    # --- larger test: exercises the T grid (multiple tiles, >=4 steps) and no external input ---
    T2 = 2000
    t2 = jnp.linspace(0.0, 4.0, T2, dtype=jnp.float32)
    band_osc2 = neural_oscillator_forward(params, t2, None)
    jax.block_until_ready(band_osc2)
    ref2 = _reference_forward(params, t2, None)
    for band in BANDS:
        assert band_osc2[band].shape == (T2, P_BAND)
        assert jnp.allclose(band_osc2[band], ref2[band], atol=ATOL, rtol=RTOL), band

    print("KERNEL_OK")
</pallas_src>

<mosaic_0001>
module attributes {stable_mosaic.version = 11 : i64} {
  func.func @_oscillator_kernel(%arg0: i32, %arg1: memref<8x1xf32, #tpu.memory_space<vmem>>, %arg2: memref<8x128xf32, #tpu.memory_space<vmem>>, %arg3: memref<128x128xbf16, #tpu.memory_space<vmem>>, %arg4: memref<8x128xf32, #tpu.memory_space<vmem>>) attributes {dimension_semantics = [#tpu.dimension_semantics<parallel>], iteration_bounds = array<i64: 1>, scalar_prefetch = 0 : i64, scratch_operands = 0 : i64, tpu.core_type = #tpu.core_type<tc>, window_params = [{transform_indices = @transform_0, window_bounds = array<i64: 8, 1>}, {pipeline_mode = #tpu.pipeline_mode<synchronous>, transform_indices = @transform_1, window_bounds = array<i64: 8, 128>}, {pipeline_mode = #tpu.pipeline_mode<synchronous>, transform_indices = @transform_2, window_bounds = array<i64: 128, 128>}, {transform_indices = @transform_3, window_bounds = array<i64: 8, 128>}]} {
    %c0 = arith.constant 0 : index
    %c0_0 = arith.constant 0 : index
    %0 = vector.load %arg1[%c0, %c0_0] : memref<8x1xf32, #tpu.memory_space<vmem>>, vector<8x1xf32>
    %c0_1 = arith.constant 0 : index
    %c0_2 = arith.constant 0 : index
    %1 = vector.load %arg2[%c0_1, %c0_2] : memref<8x128xf32, #tpu.memory_space<vmem>>, vector<1x128xf32>
    %c1 = arith.constant 1 : index
    %c0_3 = arith.constant 0 : index
    %2 = vector.load %arg2[%c1, %c0_3] : memref<8x128xf32, #tpu.memory_space<vmem>>, vector<1x128xf32>
    %c2 = arith.constant 2 : index
    %c0_4 = arith.constant 0 : index
    %3 = vector.load %arg2[%c2, %c0_4] : memref<8x128xf32, #tpu.memory_space<vmem>>, vector<1x128xf32>
    %4 = vector.broadcast %1 : vector<1x128xf32> to vector<8x128xf32>
    %5 = vector.broadcast %0 : vector<8x1xf32> to vector<8x128xf32>
    %6 = arith.mulf %4, %5 : vector<8x128xf32>
    %7 = vector.broadcast %2 : vector<1x128xf32> to vector<8x128xf32>
    %8 = arith.addf %6, %7 : vector<8x128xf32>
    %9 = math.sin %8 : vector<8x128xf32>
    %10 = arith.truncf %9 : vector<8x128xf32> to vector<8x128xbf16>
    %c0_5 = arith.constant 0 : index
    %c0_6 = arith.constant 0 : index
    %11 = vector.load %arg3[%c0_5, %c0_6] : memref<128x128xbf16, #tpu.memory_space<vmem>>, vector<128x128xbf16>
    %cst = arith.constant dense<0.000000e+00> : vector<8x128xf32>
    %12 = tpu.matmul %10, %11, %cst {dimension_numbers = #tpu.dot_dimension_numbers<[1], [0], [0], [1], [0, 0, 1, 1], [], []>} : vector<8x128xbf16>, vector<128x128xbf16>, vector<8x128xf32> -> vector<8x128xf32>
    %13 = vector.broadcast %3 : vector<1x128xf32> to vector<8x128xf32>
    %14 = arith.addf %12, %13 : vector<8x128xf32>
    %c0_7 = arith.constant 0 : index
    %c0_8 = arith.constant 0 : index
    %15 = vector.load %arg4[%c0_7, %c0_8] : memref<8x128xf32, #tpu.memory_space<vmem>>, vector<8x128xf32>
    tpu.vector_store %arg4[%c0_7, %c0_8], %14 {strides = array<i32>} : memref<8x128xf32, #tpu.memory_space<vmem>>, vector<8x128xf32>,
    return
  }
  func.func @transform_0(%arg0: i32) -> (i32, i32) {
    %c0_i32 = arith.constant 0 : i32
    %c0_i32_0 = arith.constant 0 : i32
    return %arg0, %c0_i32 : i32, i32
  }
  func.func @transform_1(%arg0: i32) -> (i32, i32) {
    %c0_i32 = arith.constant 0 : i32
    %c0_i32_0 = arith.constant 0 : i32
    %c0_i32_1 = arith.constant 0 : i32
    return %c0_i32, %c0_i32_0 : i32, i32
  }
  func.func @transform_2(%arg0: i32) -> (i32, i32) {
    %c0_i32 = arith.constant 0 : i32
    %c0_i32_0 = arith.constant 0 : i32
    %c0_i32_1 = arith.constant 0 : i32
    return %c0_i32, %c0_i32_0 : i32, i32
  }
  func.func @transform_3(%arg0: i32) -> (i32, i32) {
    %c0_i32 = arith.constant 0 : i32
    %c0_i32_0 = arith.constant 0 : i32
    return %arg0, %c0_i32 : i32, i32
  }
}

</mosaic_0001>

<llo_original>
// kernel: tpu_custom_call.1
$region0: #{tpu_custom_call.1}
  #allocation0 [shape = 'u32[]', space=smem, size = 0x4, offset = 0x4, fixed_abs, tag = 'smem constant byte address 0x4 - core index']
  #allocation1 [shape = 'u32[144,128]{1,0:T(1,128)}', space=vmem, size = 0x12000, scoped, tag = 'internal scratch']
  %s0 = inlined_call_operand.vmem [shape: f32[8,1], index: 0, kind: input, shape index: {}]
  %s1 = inlined_call_operand.vmem [shape: f32[8,128], index: 1, kind: input, shape index: {}]
  %s2 = inlined_call_operand.hbm [shape: bf16[128,128], index: 2, kind: input, shape index: {}]
  %s3 = inlined_call_operand.hbm [shape: f32[8,128], index: 3, kind: output, shape index: {}]
  %s4 = sld [smem:[#allocation0]]
  $region26: #{tpu_custom_call.1} parent=0
    _
  %s6 = ssub.s32 1, %s4
  %s7 = scalar_select 0, %s6, %s4
  $region1: #{tpu_custom_call.1} parent=0
    #allocation2 [shape = 'u8[32768]{0}', space=vmem, size = 0x8000, scoped, tag = 'input window, operand 2, single buffered']
    #allocation3 [shape = 's32[1]{0}', space=sflag, size = 0x4, scoped, tag = 'scoped memory for tpu_custom_call.1']
    #allocation4 [shape = 's32[1]{0}', space=sflag, size = 0x4, scoped, tag = 'scoped memory for tpu_custom_call.1']
    #allocation5 [shape = 'u8[4096]{0}', space=vmem, size = 0x1000, scoped, tag = 'output window, operand 0, single buffered']
    %8 = vsyncpa [#allocation3], 0
    %9 = vsyncpa [#allocation4], 0
    // Predicated region
    $region2: #{tpu_custom_call.1} parent=1 // pred_check
      _
    $region3: #{tpu_custom_call.1} parent=1 // pred_check_branch
      %11 = sbr.rel (0) target = $region5
    $region4: #{tpu_custom_call.1} parent=1 // pred_region
      _
    $region5: #{tpu_custom_call.1} parent=1 // pred_fallthru
      _
    // Predicated region
    $region6: #{tpu_custom_call.1} parent=1 // pred_check
      _
    $region7: #{tpu_custom_call.1} parent=1 // pred_check_branch
      %13 = sbr.rel (0) target = $region9
    $region8: #{tpu_custom_call.1} parent=1 // pred_region
      _
    $region9: #{tpu_custom_call.1} parent=1 // pred_fallthru
      _
    // Predicated region
    $region10: #{tpu_custom_call.1} parent=1 // pred_check
      _
    $region11: #{tpu_custom_call.1} parent=1 // pred_check_branch
      %15 = sbr.rel (0) target = $region13
    $region12: #{tpu_custom_call.1} parent=1 // pred_region
      %s17 = ssub.s32 1024, 1024
      %18 = vsyncadd [#allocation3], %s17
      %s19 = sshll.u32 [#allocation2], 4
      %s20 = int_to_ptr.vmem [resolvable:$true] %s19
      %25 = dma.hbm_to_vmem [thread:$0]  %s2, 1024, %s20, [#allocation3], 64, 64, 4
    $region13: #{tpu_custom_call.1} parent=1 // pred_fallthru
      _
    // Predicated region
    $region14: #{tpu_custom_call.1} parent=1 // pred_check
      _
    $region15: #{tpu_custom_call.1} parent=1 // pred_check_branch
      %27 = sbr.rel (0) target = $region17
    $region16: #{tpu_custom_call.1} parent=1 // pred_region
      %28 = dma.done [#allocation3], 1024
    $region17: #{tpu_custom_call.1} parent=1 // pred_fallthru
      _
    %v30 = vld [vmem:[%s0] sm:$0xff]
    %v31 = vld [vmem:[%s1] sm:$0x1]
    %v32 = vld [vmem:[%s1 + $0x1] sm:$0x1]
    %v33 = vld [vmem:[%s1 + $0x2] sm:$0x1]
    %v34 = vlaneseq
    %v35 = vshrl.u32 %v34, 7
    %v36 = vsub.s32 0, %v35
    %v37 = vrot.slane %v31, %v36
    %39 = vset.pattern.permute.xlu0 0
    %40 = vperm.xlu0 %39, %v30
    %v41 = vpop.permute.xlu0 %40
    %v43 = vmul.f32 %v37, %v41
    %v44 = vlaneseq
    %v45 = vshrl.u32 %v44, 7
    %v46 = vsub.s32 0, %v45
    %v47 = vrot.slane %v32, %v46
    %v48 = vadd.f32 %v43, %v47
    %v49 = vand.u32 2147483647, %v48
    %vm50 = vcmp.le.f32.partialorder %v49, 0.7853982
    %vm51 = vcmp.lt.s32.totalorder %v48, 0
    %v52 = vand.u32 %v48, 2139095040
    %v53 = vshrl.u32 %v52, 23
    %v54 = vsub.s32 %v53, 127
    %v55 = vand.u32 2147483647, %v48
    %v56 = vand.u32 %v55, 8388607
    %v57 = vor.u32 %v56, 8388608
    %v58 = vsub.s32 0, %v57
    %v59 = vadd.s32 %v54, 1
    %vm60 = vcmp.gt.s32.totalorder %v59, 0
    %v61 = vsel %vm60, %v59, 0
    %v62 = vshrl.u32 %v61, 5
    %v63 = vand.u32 %v61, 31
    %v64 = vsub.s32 32, %v63
    %v65 = vshrl.u32 683565275, %v64
    %v66 = vshll.u32 683565275, %v63
    %v67 = vshrl.u32 2475754826, %v64
    %v68 = vor.u32 %v66, %v67
    %v69 = vshll.u32 2475754826, %v63
    %v70 = vshrl.u32 2131351028, %v64
    %v71 = vor.u32 %v69, %v70
    %v72 = vshll.u32 2131351028, %v63
    %v73 = vshrl.u32 2102212464, %v64
    %v74 = vor.u32 %v72, %v73
    %v75 = vshll.u32 2102212464, %v63
    %v76 = vshrl.u32 920167782, %v64
    %v77 = vor.u32 %v75, %v76
    %v78 = vshll.u32 920167782, %v63
    %v79 = vshrl.u32 1326507024, %v64
    %v80 = vor.u32 %v78, %v79
    %vm81 = vcmp.lt.s32.totalorder %v62, 1
    %vm82 = vcmp.lt.s32.totalorder %v62, 2
    %vm83 = vcmp.lt.s32.totalorder %v62, 3
    %vm84 = vcmp.lt.s32.totalorder %v62, 4
    %v85 = vsel %vm81, %v65, %v68
    %v86 = vsel %vm84, %v74, 2102212464
    %v87 = vsel %vm83, %v71, %v86
    %v88 = vsel %vm82, %v85, %v87
    %v89 = vsel %vm81, %v68, %v71
    %v90 = vsel %vm84, %v77, 920167782
    %v91 = vsel %vm83, %v74, %v90
    %v92 = vsel %vm82, %v89, %v91
    %v93 = vsel %vm81, %v71, %v74
    %v94 = vsel %vm84, %v80, 1326507024
    %v95 = vsel %vm83, %v77, %v94
    %v96 = vsel %vm82, %v93, %v95
    %v97 = vshll.u32 %v57, 8
    %v98 = vmul.u32.u64.compose %v97, %v96
    %v99 = vextract.low.u32 %v98
    %v100 = vextract.high.u32 %v98
    %v101 = vmul.u32.u64.compose %v97, %v92
    %v102 = vextract.low.u32 %v101
    %v103 = vextract.high.u32 %v101
    %v104 = vmul.u32 %v97, %v88
    %v105 = vadd.s32 %v100, %v102
    %vm106 = vc.u32 %v100, %v102
    %v107 = vadd.s32 %v103, 1
    %v108 = vsel %vm106, %v107, %v103
    %v109 = vadd.s32 %v104, %v108
    %v110 = vadd.s32 %v109, 536870912
    %v111 = vshrl.u32 %v110, 30
    %v112 = vshll.u32 %v111, 30
    %v113 = vsub.s32 %v109, %v112
    %vm114 = vcmp.lt.s32.totalorder %v113, 0
    %v115 = vsub.s32 0, %v113
    %v116 = vsel %vm114, %v115, %v113
    %v117 = vclz %v116
    %v118 = vsub.s32 %v117, 2
    %vm119 = vcmp.gt.s32.totalorder 0, %v118
    %v120 = vsel %vm119, 0, %v118
    %v121 = vsub.s32 32, %v120
    %v122 = vshll.u32 %v113, %v120
    %v123 = vshrl.u32 %v105, %v121
    %v124 = vor.u32 %v122, %v123
    %v125 = vsub.s32 4294967266, %v120
    %v126 = vadd.s32 %v125, 127
    %v127 = vshll.u32 %v126, 23
    %v128 = vor.u32 4788187, %v127
    %v129 = vand.u32 2147483647, %v128
    %v131 = vcvt.s32.f32 %v124
    %v132 = vmul.f32 %v131, %v129
    %v133 = vxor.u32 %v132, 2147483648
    %v134 = vsel %vm51, %v133, %v132
    %v135 = vsub.s32 4, %v111
    %v136 = vsel %vm51, %v135, %v111
    %v137 = vsel %vm50, %v48, %v134
    %v138 = vsel %vm50, 0, %v136
    %v139 = vcosq.f32.pop %v137
    %v140 = vsinq.f32.pop %v137
    %vm141 = vweird.f32 %v48
    %v142 = vadd.s32 %v138, 3
    %v143 = vand.u32 %v142, 3
    %vm144 = vcmp.lt.s32.totalorder %v143, 2
    %vm145 = vcmp.eq.s32.totalorder %v143, 0
    %v146 = vxor.u32 %v140, 2147483648
    %v147 = vsel %vm145, %v139, %v146
    %vm148 = vcmp.eq.s32.totalorder %v143, 2
    %v149 = vxor.u32 %v139, 2147483648
    %v150 = vsel %vm148, %v149, %v140
    %v151 = vsel %vm144, %v147, %v150
    %v152 = vsel %vm141, nan, %v151
    %v153 = vpack.c.bf16 %v152, %v152
    %v154 = vld [vmem:[#allocation2] sm:$0xf]
    %v155 = vld [vmem:[#allocation2 + $0x4] sm:$0xf]
    %v156 = vld [vmem:[#allocation2 + $0x8] sm:$0xf]
    %v157 = vld [vmem:[#allocation2 + $0xc] sm:$0xf]
    %v158 = vld [vmem:[#allocation2 + $0x10] sm:$0xf]
    %v159 = vld [vmem:[#allocation2 + $0x14] sm:$0xf]
    %v160 = vld [vmem:[#allocation2 + $0x18] sm:$0xf]
    %v161 = vld [vmem:[#allocation2 + $0x1c] sm:$0xf]
    %v162 = vld [vmem:[#allocation2 + $0x20] sm:$0xf]
    %v163 = vld [vmem:[#allocation2 + $0x24] sm:$0xf]
    %v164 = vld [vmem:[#allocation2 + $0x28] sm:$0xf]
    %v165 = vld [vmem:[#allocation2 + $0x2c] sm:$0xf]
    %v166 = vld [vmem:[#allocation2 + $0x30] sm:$0xf]
    %v167 = vld [vmem:[#allocation2 + $0x34] sm:$0xf]
    %v168 = vld [vmem:[#allocation2 + $0x38] sm:$0xf]
    %v169 = vld [vmem:[#allocation2 + $0x3c] sm:$0xf]
    %v170 = vlaneseq
    %v171 = vshrl.u32 %v170, 7
    %v172 = vsub.s32 0, %v171
    %v173 = vrot.slane %v33, %v172
    %v190 = vunpack.c.l.b16 %v154
    %v191 = vunpack.c.l.b16 %v155
    %v192 = vunpack.c.l.b16 %v156
    %v193 = vunpack.c.l.b16 %v157
    %v194 = vunpack.c.l.b16 %v158
    %v195 = vunpack.c.l.b16 %v159
    %v196 = vunpack.c.l.b16 %v160
    %v197 = vunpack.c.l.b16 %v161
    %v198 = vunpack.c.l.b16 %v162
    %v199 = vunpack.c.l.b16 %v163
    %v200 = vunpack.c.l.b16 %v164
    %v201 = vunpack.c.l.b16 %v165
    %v202 = vunpack.c.l.b16 %v166
    %v203 = vunpack.c.l.b16 %v167
    %v204 = vunpack.c.l.b16 %v168
    %v205 = vunpack.c.l.b16 %v169
    %v206 = vpack.c.b16 %v191, %v190
    %v207 = vpack.c.b16 %v193, %v192
    %v208 = vpack.c.b16 %v195, %v194
    %v209 = vpack.c.b16 %v197, %v196
    %v210 = vpack.c.b16 %v199, %v198
    %v211 = vpack.c.b16 %v201, %v200
    %v212 = vpack.c.b16 %v203, %v202
    %v213 = vpack.c.b16 %v205, %v204
    %222 = vmatprep.subr.bf16.mxu0 0
    %223 = vmatpush1.bf16.msra.mxu0 %v206
    %224 = vmatprep.subr.bf16.mxu0 0
    %225 = vmatpush1.bf16.msra.mxu0 %v207
    %226 = vmatprep.subr.bf16.mxu0 0
    %227 = vmatpush1.bf16.msra.mxu0 %v208
    %228 = vmatprep.subr.bf16.mxu0 0
    %229 = vmatpush1.bf16.msra.mxu0 %v209
    %230 = vmatprep.subr.bf16.mxu0 0
    %231 = vmatpush1.bf16.msra.mxu0 %v210
    %232 = vmatprep.subr.bf16.mxu0 0
    %233 = vmatpush1.bf16.msra.mxu0 %v211
    %234 = vmatprep.subr.bf16.mxu0 0
    %235 = vmatpush1.bf16.msra.mxu0 %v212
    %236 = vmatprep.subr.bf16.mxu0 0
    %237 = vmatpush1.bf16.msra.mxu0 %v213
    %238 = vmatprep.subr.bf16.mxu0 0
    %239 = vmatpush1.bf16.msra.mxu0 0
    %240 = vmatprep.subr.bf16.mxu0 0
    %241 = vmatpush1.bf16.msra.mxu0 0
    %242 = vmatprep.subr.bf16.mxu0 0
    %243 = vmatpush1.bf16.msra.mxu0 0
    %244 = vmatprep.subr.bf16.mxu0 0
    %245 = vmatpush1.bf16.msra.mxu0 0
    %246 = vmatprep.subr.bf16.mxu0 0
    %247 = vmatpush1.bf16.msra.mxu0 0
    %248 = vmatprep.subr.bf16.mxu0 0
    %249 = vmatpush1.bf16.msra.mxu0 0
    %250 = vmatprep.subr.bf16.mxu0 0
    %251 = vmatpush1.bf16.msra.mxu0 0
    %252 = vmatprep.subr.bf16.mxu0 0
    %253 = vmatpush1.bf16.msra.mxu0 0
    %254 = vmatprep.mubr.bf16.mxu0 0
    %255 = vmatmul.mubr.bf16.gmra.mrb[0].mxu0 %v153
    %v256 = vpop.f32.mrb[0].mxu0
    %v257 = vadd.f32 %v173, %v256
    %v258 = vpop.f32.mrb[0].mxu0
    %v259 = vpop.f32.mrb[0].mxu0
    %v260 = vpop.f32.mrb[0].mxu0
    %261 = vdwg.mxu0
    %262 = vst [vmem:[#allocation5] sm:$0xff] %v257
    // Predicated region
    $region18: #{tpu_custom_call.1} parent=1 // pred_check
      _
    $region19: #{tpu_custom_call.1} parent=1 // pred_check_branch
      %264 = sbr.rel (0) target = $region21
    $region20: #{tpu_custom_call.1} parent=1 // pred_region
      %s266 = ssub.s32 128, 128
      %267 = vsyncadd [#allocation4], %s266
      %s269 = sshll.u32 [#allocation5], 4
      %s270 = int_to_ptr.vmem [resolvable:$true] %s269
      %272 = dma.vmem_to_hbm [thread:$0]  %s270, 128, %s3, [#allocation4]
    $region21: #{tpu_custom_call.1} parent=1 // pred_fallthru
      _
    // Predicated region
    $region22: #{tpu_custom_call.1} parent=1 // pred_check
      _
    $region23: #{tpu_custom_call.1} parent=1 // pred_check_branch
      %274 = sbr.rel (0) target = $region25
    $region24: #{tpu_custom_call.1} parent=1 // pred_region
      %275 = dma.done [#allocation4], 128
    $region25: #{tpu_custom_call.1} parent=1 // pred_fallthru
      _
    %276 = vsyncpa [#allocation3], 1
    %277 = vsyncpa [#allocation4], 1

</llo_original>
